<compile_context>
chip_gen: v6e
topology: v6e:2x2x1
jax: 0.10.0
libtpu: 0.0.40
codegen_flags: <defaults>
</compile_context>

<pallas_src>
import math
import numpy as np
import jax
import jax.numpy as jnp
from jax import lax
from jax.experimental import pallas as pl
from jax.experimental.pallas import tpu as pltpu


# ----------------------- parameter / glue setup (plain JAX / numpy) ----------------

def _to_mel(hz):
    return 2595.0 * np.log10(1.0 + hz / 700.0)


def _to_hz(mel):
    return 700.0 * (10.0 ** (mel / 2595.0) - 1.0)


def make_sinc_filters(out_channels, kernel_size, sample_rate=16000):
    """Reproduces SquaredSincConv_fast.__init__ + in-forward filter construction."""
    if kernel_size % 2 == 0:
        kernel_size += 1
    min_hz, max_hz = 0.0, sample_rate / 2.0
    mel_min, mel_max = _to_mel(min_hz), _to_mel(max_hz)
    delta_mel = abs(mel_max - mel_min) / (out_channels + 1.0)
    f_mel = mel_min + delta_mel * np.arange(0, out_channels + 2)
    lower = _to_hz(f_mel[:-2])
    upper = _to_hz(f_mel[2:])
    center = _to_hz(f_mel[1:-1])
    band = (upper - lower) / 2.0

    center_hz = jnp.asarray(center, jnp.float32).reshape(-1, 1)   # (C, 1)
    band_hz = jnp.asarray(band, jnp.float32).reshape(-1, 1)       # (C, 1)

    half = kernel_size // 2
    n_lin = jnp.linspace(0.0, kernel_size / 2.0 - 1.0, num=half, dtype=jnp.float32)
    window = 0.54 - 0.46 * jnp.cos(2.0 * math.pi * n_lin / kernel_size)        # (half,)
    n = (kernel_size - 1) / 2.0
    n_ = (2.0 * math.pi * jnp.arange(-n, 0.0, dtype=jnp.float32)
          / sample_rate)[None, :]                                              # (1, half)

    low = jnp.clip(center_hz - band_hz, min_hz, max_hz)
    high = jnp.clip(center_hz + band_hz, min_hz, max_hz)
    bandw = high - low
    f_times_t_center = ((high + low) / 2.0) @ n_                               # (C, half)
    f_times_t_band = (bandw @ n_) * 0.5 * 0.5
    left = (jnp.sin(f_times_t_band) / f_times_t_band) ** 2 \
        * jnp.cos(f_times_t_center) * window                                   # (C, half)
    filters = jnp.concatenate(
        [left, jnp.ones((out_channels, 1), jnp.float32), left[:, ::-1]], axis=1)
    return filters.astype(jnp.float32), kernel_size                            # (C, K)


def adaptive_pool_matrix(l_in, l_out):
    """PyTorch AdaptiveAvgPool1d semantics as an (l_in, l_out) averaging matrix."""
    P = np.zeros((l_in, l_out), np.float32)
    for i in range(l_out):
        s = (i * l_in) // l_out
        e = -((-(i + 1) * l_in) // l_out)   # ceil((i+1)*l_in / l_out)
        P[s:e, i] = 1.0 / (e - s)
    return P


# --------------------------------- Pallas kernel ----------------------------------

def _ms_ssinc_kernel(t_valid_ref, filt_ref, x_ref, pool_ref, out_ref):
    # Per branch (one grid step):
    #   t_valid_ref : SMEM (n_branch,) int32   valid conv length per branch
    #   filt_ref    : VMEM (C, Kmax)   f32     zero-padded sinc filter (branch dim squeezed)
    #   x_ref       : VMEM (B, Lpad)   f32     zero-padded waveform (shared, stays resident)
    #   pool_ref    : VMEM (Tpad, P)   f32     zero-padded adaptive-avg-pool matrix
    #   out_ref     : VMEM (B, C, P)   f32     this branch's slice of the (B,3,C,P) output
    branch = pl.program_id(0)

    w = filt_ref[...]               # (C, Kmax)
    x = x_ref[...]                  # (B, Lpad)
    pool = pool_ref[...]            # (Tpad, P)

    C, k_max = w.shape
    B = x.shape[0]
    T_pad, P = pool.shape

    # --- SquaredSincConv (F.conv1d, valid, stride 1) as Kmax shifted FMAs on the VPU ---
    # y[b, c, t] = sum_j w[c, j] * x[b, t + j]   (taps j >= K_branch are zero-padded)
    y = jnp.zeros((B, C, T_pad), jnp.float32)
    for j in range(k_max):                          # static unroll, Kmax small here
        xj = x[:, j:j + T_pad]                      # (B, Tpad) static lane slice
        y = y + w[:, j][None, :, None] * xj[:, None, :]

    # --- BatchNorm1d: training-mode batch stats over (batch, valid time) per channel ---
    # single-pass sum / sum-of-squares in f32; positions t >= t_valid are masked out.
    tv = t_valid_ref[branch]
    t_idx = lax.broadcasted_iota(jnp.int32, (1, 1, T_pad), 2)
    valid = t_idx < tv                              # (1, 1, Tpad)
    ym = jnp.where(valid, y, 0.0)

    inv_cnt = 1.0 / (tv * B).astype(jnp.float32)
    s1 = jnp.sum(ym, axis=2, keepdims=True)         # (B, C, 1)  lane reduce (XLU)
    s2 = jnp.sum(ym * ym, axis=2, keepdims=True)    # (B, C, 1)
    mean = jnp.sum(s1, axis=0, keepdims=True) * inv_cnt             # (1, C, 1)
    var = jnp.sum(s2, axis=0, keepdims=True) * inv_cnt - mean * mean
    var = jnp.maximum(var, 0.0)

    # fold BN affine (PyTorch default init gamma=1, beta=0) into one scale/shift pass
    scale = lax.rsqrt(var + 1e-5)                   # (1, C, 1)
    shift = -mean * scale

    # --- normalize + ReLU (single fused elementwise pass) ---
    y = jnp.maximum(y * scale + shift, 0.0)

    # --- AdaptiveAvgPool1d(P) as one (B*C, Tpad) @ (Tpad, P) MXU matmul ---
    # (zero rows of `pool` drop the invalid / padded t positions automatically)
    pooled = jnp.dot(y.reshape(B * C, T_pad), pool,
                     preferred_element_type=jnp.float32)             # (B*C, P)
    out_ref[...] = pooled.reshape(B, C, P)


def ms_ssincnet_forward(x, out_channels, kernel_sizes, length, sample_rate=16000):
    """x: (B, 1, L) waveform -> (B, n_branch, out_channels, length)."""
    B, _, L = x.shape
    n_branch = len(kernel_sizes)

    filts, ks_adj = [], []
    for ks in kernel_sizes:
        f, k = make_sinc_filters(out_channels, ks, sample_rate)
        filts.append(f)
        ks_adj.append(k)
    k_max = max(ks_adj)
    t_list = [L - k + 1 for k in ks_adj]            # valid conv length per branch
    t_max = max(t_list)

    # Lane-align the time axis: all (B, C, T) intermediates and the pool matmul
    # contraction dim become full 128-lane vregs; padded positions are masked /
    # hit zero pool rows only.
    t_pad = ((t_max + 127) // 128) * 128
    # pad the waveform so every shifted slice x[:, j:j+t_pad] (j < k_max) stays in
    # bounds, and keep the lane axis 128-aligned (padded taps hit zero weights).
    l_pad = ((t_pad + k_max - 1 + 127) // 128) * 128
    x_pad = jnp.pad(x[:, 0, :], ((0, 0), (0, l_pad - L)))                        # (B, Lpad)

    filt_pack = jnp.stack(
        [jnp.pad(f, ((0, 0), (0, k_max - f.shape[1]))) for f in filts], axis=0)  # (n,C,Kmax)
    pool_pack = jnp.stack(
        [jnp.asarray(np.pad(adaptive_pool_matrix(t, length),
                            ((0, t_pad - t), (0, 0)))) for t in t_list], axis=0)  # (n,Tpad,P)
    t_valid = jnp.asarray(t_list, jnp.int32)                                      # (n,)

    grid_spec = pltpu.PrefetchScalarGridSpec(
        num_scalar_prefetch=1,
        grid=(n_branch,),
        in_specs=[
            # branch dim squeezed (None) -> kernel sees (C, Kmax) / (Tpad, P) directly
            pl.BlockSpec((None, out_channels, k_max), lambda i, tv: (i, 0, 0)),   # filters
            pl.BlockSpec((B, l_pad), lambda i, tv: (0, 0)),                       # waveform
            pl.BlockSpec((None, t_pad, length), lambda i, tv: (i, 0, 0)),         # pool mat
        ],
        out_specs=pl.BlockSpec((B, None, out_channels, length),
                               lambda i, tv: (0, i, 0, 0)),
    )

    return pl.pallas_call(
        _ms_ssinc_kernel,
        out_shape=jax.ShapeDtypeStruct((B, n_branch, out_channels, length), jnp.float32),
        grid_spec=grid_spec,
        compiler_params=pltpu.CompilerParams(
            dimension_semantics=("parallel",),          # branch axis -> v7x megacore
            vmem_limit_bytes=32 * 1024 * 1024),
    )(t_valid, filt_pack, x_pad, pool_pack)


# ------------------------------- pure-JAX reference -------------------------------

def ms_ssincnet_ref(x, out_channels, kernel_sizes, length):
    outs = []
    for ks in kernel_sizes:
        filt, _ = make_sinc_filters(out_channels, ks)
        y = jax.lax.conv_general_dilated(
            x, filt[:, None, :], window_strides=(1,), padding='VALID',
            dimension_numbers=('NCH', 'OIH', 'NCH'))
        mean = jnp.mean(y, axis=(0, 2), keepdims=True)
        var = jnp.mean((y - mean) ** 2, axis=(0, 2), keepdims=True)
        y = (y - mean) / jnp.sqrt(var + 1e-5)
        y = jnp.maximum(y, 0.0)
        P = adaptive_pool_matrix(y.shape[-1], length)
        outs.append(jnp.einsum('bct,tp->bcp', y, P))
    return jnp.stack(outs, axis=1)


# ------------------------------------- main ----------------------------------------

if __name__ == "__main__":
    B, L = 2, 64
    out_channels = 4
    kernel_sizes = (5, 9, 17)   # one per branch, odd (even would be bumped by +1)
    length = 8                  # AdaptiveAvgPool1d target length

    key = jax.random.PRNGKey(0)
    x = jax.random.normal(key, (B, 1, L), dtype=jnp.float32)   # NCW waveform

    out = ms_ssincnet_forward(x, out_channels, kernel_sizes, length)
    out = jax.block_until_ready(out)
    assert out.shape == (B, len(kernel_sizes), out_channels, length)

    ref = ms_ssincnet_ref(x, out_channels, kernel_sizes, length)
    np.testing.assert_allclose(np.asarray(out), np.asarray(ref), rtol=1e-3, atol=1e-3)

    print("KERNEL_OK")
</pallas_src>

<mosaic_0001>
module attributes {stable_mosaic.version = 11 : i64} {
  func.func @_ms_ssinc_kernel(%arg0: i32, %arg1: memref<3xi32, #tpu.memory_space<smem>>, %arg2: memref<1x4x17xf32, #tpu.memory_space<vmem>>, %arg3: memref<2x256xf32, #tpu.memory_space<vmem>>, %arg4: memref<1x128x8xf32, #tpu.memory_space<vmem>>, %arg5: memref<2x1x4x8xf32, #tpu.memory_space<vmem>>) attributes {dimension_semantics = [#tpu.dimension_semantics<parallel>], iteration_bounds = array<i64: 3>, scalar_prefetch = 1 : i64, scratch_operands = 0 : i64, tpu.core_type = #tpu.core_type<tc>, window_params = [{transform_indices = @transform_0, window_bounds = array<i64: 1, 4, 17>}, {pipeline_mode = #tpu.pipeline_mode<synchronous>, transform_indices = @transform_1, window_bounds = array<i64: 2, 256>}, {transform_indices = @transform_2, window_bounds = array<i64: 1, 128, 8>}, {transform_indices = @transform_3, window_bounds = array<i64: 2, 1, 4, 8>}]} {
    %c0 = arith.constant 0 : index
    %c0_0 = arith.constant 0 : index
    %c0_1 = arith.constant 0 : index
    %0 = vector.load %arg2[%c0, %c0_0, %c0_1] : memref<1x4x17xf32, #tpu.memory_space<vmem>>, vector<1x4x17xf32>
    %1 = vector.shape_cast %0 : vector<1x4x17xf32> to vector<4x17xf32>
    %c0_2 = arith.constant 0 : index
    %c0_3 = arith.constant 0 : index
    %2 = vector.load %arg3[%c0_2, %c0_3] : memref<2x256xf32, #tpu.memory_space<vmem>>, vector<2x256xf32>
    %c0_4 = arith.constant 0 : index
    %c0_5 = arith.constant 0 : index
    %c0_6 = arith.constant 0 : index
    %3 = vector.load %arg4[%c0_4, %c0_5, %c0_6] : memref<1x128x8xf32, #tpu.memory_space<vmem>>, vector<1x128x8xf32>
    %4 = vector.shape_cast %3 : vector<1x128x8xf32> to vector<128x8xf32>
    %cst = arith.constant 0.000000e+00 : f32
    %5 = vector.broadcast %cst : f32 to vector<2x4x128xf32>
    %6 = vector.extract_strided_slice %2 {offsets = [0, 0], sizes = [2, 128], strides = [1, 1]} : vector<2x256xf32> to vector<2x128xf32>
    %7 = vector.extract_strided_slice %1 {offsets = [0, 0], sizes = [4, 1], strides = [1, 1]} : vector<4x17xf32> to vector<4x1xf32>
    %8 = vector.shape_cast %7 : vector<4x1xf32> to vector<4xf32>
    %9 = vector.shape_cast %8 : vector<4xf32> to vector<1x4x1xf32>
    %10 = vector.shape_cast %6 : vector<2x128xf32> to vector<2x1x128xf32>
    %11 = vector.broadcast %9 : vector<1x4x1xf32> to vector<2x4x128xf32>
    %12 = vector.broadcast %10 : vector<2x1x128xf32> to vector<2x4x128xf32>
    %13 = arith.mulf %11, %12 : vector<2x4x128xf32>
    %14 = arith.addf %5, %13 : vector<2x4x128xf32>
    %15 = vector.extract_strided_slice %2 {offsets = [0, 1], sizes = [2, 128], strides = [1, 1]} : vector<2x256xf32> to vector<2x128xf32>
    %16 = vector.extract_strided_slice %1 {offsets = [0, 1], sizes = [4, 1], strides = [1, 1]} : vector<4x17xf32> to vector<4x1xf32>
    %17 = vector.shape_cast %16 : vector<4x1xf32> to vector<4xf32>
    %18 = vector.shape_cast %17 : vector<4xf32> to vector<1x4x1xf32>
    %19 = vector.shape_cast %15 : vector<2x128xf32> to vector<2x1x128xf32>
    %20 = vector.broadcast %18 : vector<1x4x1xf32> to vector<2x4x128xf32>
    %21 = vector.broadcast %19 : vector<2x1x128xf32> to vector<2x4x128xf32>
    %22 = arith.mulf %20, %21 : vector<2x4x128xf32>
    %23 = arith.addf %14, %22 : vector<2x4x128xf32>
    %24 = vector.extract_strided_slice %2 {offsets = [0, 2], sizes = [2, 128], strides = [1, 1]} : vector<2x256xf32> to vector<2x128xf32>
    %25 = vector.extract_strided_slice %1 {offsets = [0, 2], sizes = [4, 1], strides = [1, 1]} : vector<4x17xf32> to vector<4x1xf32>
    %26 = vector.shape_cast %25 : vector<4x1xf32> to vector<4xf32>
    %27 = vector.shape_cast %26 : vector<4xf32> to vector<1x4x1xf32>
    %28 = vector.shape_cast %24 : vector<2x128xf32> to vector<2x1x128xf32>
    %29 = vector.broadcast %27 : vector<1x4x1xf32> to vector<2x4x128xf32>
    %30 = vector.broadcast %28 : vector<2x1x128xf32> to vector<2x4x128xf32>
    %31 = arith.mulf %29, %30 : vector<2x4x128xf32>
    %32 = arith.addf %23, %31 : vector<2x4x128xf32>
    %33 = vector.extract_strided_slice %2 {offsets = [0, 3], sizes = [2, 128], strides = [1, 1]} : vector<2x256xf32> to vector<2x128xf32>
    %34 = vector.extract_strided_slice %1 {offsets = [0, 3], sizes = [4, 1], strides = [1, 1]} : vector<4x17xf32> to vector<4x1xf32>
    %35 = vector.shape_cast %34 : vector<4x1xf32> to vector<4xf32>
    %36 = vector.shape_cast %35 : vector<4xf32> to vector<1x4x1xf32>
    %37 = vector.shape_cast %33 : vector<2x128xf32> to vector<2x1x128xf32>
    %38 = vector.broadcast %36 : vector<1x4x1xf32> to vector<2x4x128xf32>
    %39 = vector.broadcast %37 : vector<2x1x128xf32> to vector<2x4x128xf32>
    %40 = arith.mulf %38, %39 : vector<2x4x128xf32>
    %41 = arith.addf %32, %40 : vector<2x4x128xf32>
    %42 = vector.extract_strided_slice %2 {offsets = [0, 4], sizes = [2, 128], strides = [1, 1]} : vector<2x256xf32> to vector<2x128xf32>
    %43 = vector.extract_strided_slice %1 {offsets = [0, 4], sizes = [4, 1], strides = [1, 1]} : vector<4x17xf32> to vector<4x1xf32>
    %44 = vector.shape_cast %43 : vector<4x1xf32> to vector<4xf32>
    %45 = vector.shape_cast %44 : vector<4xf32> to vector<1x4x1xf32>
    %46 = vector.shape_cast %42 : vector<2x128xf32> to vector<2x1x128xf32>
    %47 = vector.broadcast %45 : vector<1x4x1xf32> to vector<2x4x128xf32>
    %48 = vector.broadcast %46 : vector<2x1x128xf32> to vector<2x4x128xf32>
    %49 = arith.mulf %47, %48 : vector<2x4x128xf32>
    %50 = arith.addf %41, %49 : vector<2x4x128xf32>
    %51 = vector.extract_strided_slice %2 {offsets = [0, 5], sizes = [2, 128], strides = [1, 1]} : vector<2x256xf32> to vector<2x128xf32>
    %52 = vector.extract_strided_slice %1 {offsets = [0, 5], sizes = [4, 1], strides = [1, 1]} : vector<4x17xf32> to vector<4x1xf32>
    %53 = vector.shape_cast %52 : vector<4x1xf32> to vector<4xf32>
    %54 = vector.shape_cast %53 : vector<4xf32> to vector<1x4x1xf32>
    %55 = vector.shape_cast %51 : vector<2x128xf32> to vector<2x1x128xf32>
    %56 = vector.broadcast %54 : vector<1x4x1xf32> to vector<2x4x128xf32>
    %57 = vector.broadcast %55 : vector<2x1x128xf32> to vector<2x4x128xf32>
    %58 = arith.mulf %56, %57 : vector<2x4x128xf32>
    %59 = arith.addf %50, %58 : vector<2x4x128xf32>
    %60 = vector.extract_strided_slice %2 {offsets = [0, 6], sizes = [2, 128], strides = [1, 1]} : vector<2x256xf32> to vector<2x128xf32>
    %61 = vector.extract_strided_slice %1 {offsets = [0, 6], sizes = [4, 1], strides = [1, 1]} : vector<4x17xf32> to vector<4x1xf32>
    %62 = vector.shape_cast %61 : vector<4x1xf32> to vector<4xf32>
    %63 = vector.shape_cast %62 : vector<4xf32> to vector<1x4x1xf32>
    %64 = vector.shape_cast %60 : vector<2x128xf32> to vector<2x1x128xf32>
    %65 = vector.broadcast %63 : vector<1x4x1xf32> to vector<2x4x128xf32>
    %66 = vector.broadcast %64 : vector<2x1x128xf32> to vector<2x4x128xf32>
    %67 = arith.mulf %65, %66 : vector<2x4x128xf32>
    %68 = arith.addf %59, %67 : vector<2x4x128xf32>
    %69 = vector.extract_strided_slice %2 {offsets = [0, 7], sizes = [2, 128], strides = [1, 1]} : vector<2x256xf32> to vector<2x128xf32>
    %70 = vector.extract_strided_slice %1 {offsets = [0, 7], sizes = [4, 1], strides = [1, 1]} : vector<4x17xf32> to vector<4x1xf32>
    %71 = vector.shape_cast %70 : vector<4x1xf32> to vector<4xf32>
    %72 = vector.shape_cast %71 : vector<4xf32> to vector<1x4x1xf32>
    %73 = vector.shape_cast %69 : vector<2x128xf32> to vector<2x1x128xf32>
    %74 = vector.broadcast %72 : vector<1x4x1xf32> to vector<2x4x128xf32>
    %75 = vector.broadcast %73 : vector<2x1x128xf32> to vector<2x4x128xf32>
    %76 = arith.mulf %74, %75 : vector<2x4x128xf32>
    %77 = arith.addf %68, %76 : vector<2x4x128xf32>
    %78 = vector.extract_strided_slice %2 {offsets = [0, 8], sizes = [2, 128], strides = [1, 1]} : vector<2x256xf32> to vector<2x128xf32>
    %79 = vector.extract_strided_slice %1 {offsets = [0, 8], sizes = [4, 1], strides = [1, 1]} : vector<4x17xf32> to vector<4x1xf32>
    %80 = vector.shape_cast %79 : vector<4x1xf32> to vector<4xf32>
    %81 = vector.shape_cast %80 : vector<4xf32> to vector<1x4x1xf32>
    %82 = vector.shape_cast %78 : vector<2x128xf32> to vector<2x1x128xf32>
    %83 = vector.broadcast %81 : vector<1x4x1xf32> to vector<2x4x128xf32>
    %84 = vector.broadcast %82 : vector<2x1x128xf32> to vector<2x4x128xf32>
    %85 = arith.mulf %83, %84 : vector<2x4x128xf32>
    %86 = arith.addf %77, %85 : vector<2x4x128xf32>
    %87 = vector.extract_strided_slice %2 {offsets = [0, 9], sizes = [2, 128], strides = [1, 1]} : vector<2x256xf32> to vector<2x128xf32>
    %88 = vector.extract_strided_slice %1 {offsets = [0, 9], sizes = [4, 1], strides = [1, 1]} : vector<4x17xf32> to vector<4x1xf32>
    %89 = vector.shape_cast %88 : vector<4x1xf32> to vector<4xf32>
    %90 = vector.shape_cast %89 : vector<4xf32> to vector<1x4x1xf32>
    %91 = vector.shape_cast %87 : vector<2x128xf32> to vector<2x1x128xf32>
    %92 = vector.broadcast %90 : vector<1x4x1xf32> to vector<2x4x128xf32>
    %93 = vector.broadcast %91 : vector<2x1x128xf32> to vector<2x4x128xf32>
    %94 = arith.mulf %92, %93 : vector<2x4x128xf32>
    %95 = arith.addf %86, %94 : vector<2x4x128xf32>
    %96 = vector.extract_strided_slice %2 {offsets = [0, 10], sizes = [2, 128], strides = [1, 1]} : vector<2x256xf32> to vector<2x128xf32>
    %97 = vector.extract_strided_slice %1 {offsets = [0, 10], sizes = [4, 1], strides = [1, 1]} : vector<4x17xf32> to vector<4x1xf32>
    %98 = vector.shape_cast %97 : vector<4x1xf32> to vector<4xf32>
    %99 = vector.shape_cast %98 : vector<4xf32> to vector<1x4x1xf32>
    %100 = vector.shape_cast %96 : vector<2x128xf32> to vector<2x1x128xf32>
    %101 = vector.broadcast %99 : vector<1x4x1xf32> to vector<2x4x128xf32>
    %102 = vector.broadcast %100 : vector<2x1x128xf32> to vector<2x4x128xf32>
    %103 = arith.mulf %101, %102 : vector<2x4x128xf32>
    %104 = arith.addf %95, %103 : vector<2x4x128xf32>
    %105 = vector.extract_strided_slice %2 {offsets = [0, 11], sizes = [2, 128], strides = [1, 1]} : vector<2x256xf32> to vector<2x128xf32>
    %106 = vector.extract_strided_slice %1 {offsets = [0, 11], sizes = [4, 1], strides = [1, 1]} : vector<4x17xf32> to vector<4x1xf32>
    %107 = vector.shape_cast %106 : vector<4x1xf32> to vector<4xf32>
    %108 = vector.shape_cast %107 : vector<4xf32> to vector<1x4x1xf32>
    %109 = vector.shape_cast %105 : vector<2x128xf32> to vector<2x1x128xf32>
    %110 = vector.broadcast %108 : vector<1x4x1xf32> to vector<2x4x128xf32>
    %111 = vector.broadcast %109 : vector<2x1x128xf32> to vector<2x4x128xf32>
    %112 = arith.mulf %110, %111 : vector<2x4x128xf32>
    %113 = arith.addf %104, %112 : vector<2x4x128xf32>
    %114 = vector.extract_strided_slice %2 {offsets = [0, 12], sizes = [2, 128], strides = [1, 1]} : vector<2x256xf32> to vector<2x128xf32>
    %115 = vector.extract_strided_slice %1 {offsets = [0, 12], sizes = [4, 1], strides = [1, 1]} : vector<4x17xf32> to vector<4x1xf32>
    %116 = vector.shape_cast %115 : vector<4x1xf32> to vector<4xf32>
    %117 = vector.shape_cast %116 : vector<4xf32> to vector<1x4x1xf32>
    %118 = vector.shape_cast %114 : vector<2x128xf32> to vector<2x1x128xf32>
    %119 = vector.broadcast %117 : vector<1x4x1xf32> to vector<2x4x128xf32>
    %120 = vector.broadcast %118 : vector<2x1x128xf32> to vector<2x4x128xf32>
    %121 = arith.mulf %119, %120 : vector<2x4x128xf32>
    %122 = arith.addf %113, %121 : vector<2x4x128xf32>
    %123 = vector.extract_strided_slice %2 {offsets = [0, 13], sizes = [2, 128], strides = [1, 1]} : vector<2x256xf32> to vector<2x128xf32>
    %124 = vector.extract_strided_slice %1 {offsets = [0, 13], sizes = [4, 1], strides = [1, 1]} : vector<4x17xf32> to vector<4x1xf32>
    %125 = vector.shape_cast %124 : vector<4x1xf32> to vector<4xf32>
    %126 = vector.shape_cast %125 : vector<4xf32> to vector<1x4x1xf32>
    %127 = vector.shape_cast %123 : vector<2x128xf32> to vector<2x1x128xf32>
    %128 = vector.broadcast %126 : vector<1x4x1xf32> to vector<2x4x128xf32>
    %129 = vector.broadcast %127 : vector<2x1x128xf32> to vector<2x4x128xf32>
    %130 = arith.mulf %128, %129 : vector<2x4x128xf32>
    %131 = arith.addf %122, %130 : vector<2x4x128xf32>
    %132 = vector.extract_strided_slice %2 {offsets = [0, 14], sizes = [2, 128], strides = [1, 1]} : vector<2x256xf32> to vector<2x128xf32>
    %133 = vector.extract_strided_slice %1 {offsets = [0, 14], sizes = [4, 1], strides = [1, 1]} : vector<4x17xf32> to vector<4x1xf32>
    %134 = vector.shape_cast %133 : vector<4x1xf32> to vector<4xf32>
    %135 = vector.shape_cast %134 : vector<4xf32> to vector<1x4x1xf32>
    %136 = vector.shape_cast %132 : vector<2x128xf32> to vector<2x1x128xf32>
    %137 = vector.broadcast %135 : vector<1x4x1xf32> to vector<2x4x128xf32>
    %138 = vector.broadcast %136 : vector<2x1x128xf32> to vector<2x4x128xf32>
    %139 = arith.mulf %137, %138 : vector<2x4x128xf32>
    %140 = arith.addf %131, %139 : vector<2x4x128xf32>
    %141 = vector.extract_strided_slice %2 {offsets = [0, 15], sizes = [2, 128], strides = [1, 1]} : vector<2x256xf32> to vector<2x128xf32>
    %142 = vector.extract_strided_slice %1 {offsets = [0, 15], sizes = [4, 1], strides = [1, 1]} : vector<4x17xf32> to vector<4x1xf32>
    %143 = vector.shape_cast %142 : vector<4x1xf32> to vector<4xf32>
    %144 = vector.shape_cast %143 : vector<4xf32> to vector<1x4x1xf32>
    %145 = vector.shape_cast %141 : vector<2x128xf32> to vector<2x1x128xf32>
    %146 = vector.broadcast %144 : vector<1x4x1xf32> to vector<2x4x128xf32>
    %147 = vector.broadcast %145 : vector<2x1x128xf32> to vector<2x4x128xf32>
    %148 = arith.mulf %146, %147 : vector<2x4x128xf32>
    %149 = arith.addf %140, %148 : vector<2x4x128xf32>
    %150 = vector.extract_strided_slice %2 {offsets = [0, 16], sizes = [2, 128], strides = [1, 1]} : vector<2x256xf32> to vector<2x128xf32>
    %151 = vector.extract_strided_slice %1 {offsets = [0, 16], sizes = [4, 1], strides = [1, 1]} : vector<4x17xf32> to vector<4x1xf32>
    %152 = vector.shape_cast %151 : vector<4x1xf32> to vector<4xf32>
    %153 = vector.shape_cast %152 : vector<4xf32> to vector<1x4x1xf32>
    %154 = vector.shape_cast %150 : vector<2x128xf32> to vector<2x1x128xf32>
    %155 = vector.broadcast %153 : vector<1x4x1xf32> to vector<2x4x128xf32>
    %156 = vector.broadcast %154 : vector<2x1x128xf32> to vector<2x4x128xf32>
    %157 = arith.mulf %155, %156 : vector<2x4x128xf32>
    %158 = arith.addf %149, %157 : vector<2x4x128xf32>
    %159 = arith.index_cast %arg0 : i32 to index
    %160 = memref.load %arg1[%159] : memref<3xi32, #tpu.memory_space<smem>>
    %161 = tpu.iota {dimensions = array<i32: 2>} : vector<1x1x128xi32>
    %162 = vector.broadcast %160 : i32 to vector<1x1x128xi32>
    %163 = arith.cmpi slt, %161, %162 : vector<1x1x128xi32>
    %cst_7 = arith.constant 0.000000e+00 : f32
    %164 = vector.shape_cast %163 : vector<1x1x128xi1> to vector<1x1x128xi1>
    %165 = vector.broadcast %164 : vector<1x1x128xi1> to vector<2x4x128xi1>
    %166 = vector.broadcast %cst_7 : f32 to vector<2x4x128xf32>
    %167 = arith.select %165, %158, %166 : vector<2x4x128xi1>, vector<2x4x128xf32>
    %c2_i32 = arith.constant 2 : i32
    %168 = arith.muli %160, %c2_i32 : i32
    %169 = arith.sitofp %168 : i32 to f32
    %cst_8 = arith.constant 1.000000e+00 : f32
    %170 = arith.divf %cst_8, %169 : f32
    %cst_9 = arith.constant dense<0.000000e+00> : vector<2x4xf32>
    %171 = vector.multi_reduction <add>, %167, %cst_9 [2] : vector<2x4x128xf32> to vector<2x4xf32>
    %172 = vector.shape_cast %171 : vector<2x4xf32> to vector<2x4x1xf32>
    %173 = arith.mulf %167, %167 : vector<2x4x128xf32>
    %cst_10 = arith.constant dense<0.000000e+00> : vector<2x4xf32>
    %174 = vector.multi_reduction <add>, %173, %cst_10 [2] : vector<2x4x128xf32> to vector<2x4xf32>
    %175 = vector.shape_cast %174 : vector<2x4xf32> to vector<2x4x1xf32>
    %cst_11 = arith.constant dense<0.000000e+00> : vector<4x1xf32>
    %176 = vector.multi_reduction <add>, %172, %cst_11 [0] : vector<2x4x1xf32> to vector<4x1xf32>
    %177 = vector.shape_cast %176 : vector<4x1xf32> to vector<1x4x1xf32>
    %178 = vector.broadcast %170 : f32 to vector<1x4x1xf32>
    %179 = arith.mulf %177, %178 : vector<1x4x1xf32>
    %cst_12 = arith.constant dense<0.000000e+00> : vector<4x1xf32>
    %180 = vector.multi_reduction <add>, %175, %cst_12 [0] : vector<2x4x1xf32> to vector<4x1xf32>
    %181 = vector.shape_cast %180 : vector<4x1xf32> to vector<1x4x1xf32>
    %182 = vector.broadcast %170 : f32 to vector<1x4x1xf32>
    %183 = arith.mulf %181, %182 : vector<1x4x1xf32>
    %184 = arith.mulf %179, %179 : vector<1x4x1xf32>
    %185 = arith.subf %183, %184 : vector<1x4x1xf32>
    %cst_13 = arith.constant 0.000000e+00 : f32
    %186 = vector.broadcast %cst_13 : f32 to vector<1x4x1xf32>
    %187 = arith.maximumf %185, %186 : vector<1x4x1xf32>
    %cst_14 = arith.constant 9.99999974E-6 : f32
    %188 = vector.broadcast %cst_14 : f32 to vector<1x4x1xf32>
    %189 = arith.addf %187, %188 : vector<1x4x1xf32>
    %190 = math.rsqrt %189 : vector<1x4x1xf32>
    %cst_15 = arith.constant 0.000000e+00 : f32
    %191 = vector.broadcast %cst_15 : f32 to vector<1x4x1xf32>
    %192 = arith.subf %191, %179 : vector<1x4x1xf32>
    %193 = arith.mulf %192, %190 : vector<1x4x1xf32>
    %194 = vector.broadcast %190 : vector<1x4x1xf32> to vector<2x4x128xf32>
    %195 = arith.mulf %158, %194 : vector<2x4x128xf32>
    %196 = vector.broadcast %193 : vector<1x4x1xf32> to vector<2x4x128xf32>
    %197 = arith.addf %195, %196 : vector<2x4x128xf32>
    %cst_16 = arith.constant 0.000000e+00 : f32
    %198 = vector.broadcast %cst_16 : f32 to vector<2x4x128xf32>
    %199 = arith.maximumf %197, %198 : vector<2x4x128xf32>
    %200 = vector.shape_cast %199 : vector<2x4x128xf32> to vector<8x128xf32>
    %cst_17 = arith.constant dense<0.000000e+00> : vector<8x8xf32>
    %201 = tpu.matmul %200, %4, %cst_17 {dimension_numbers = #tpu.dot_dimension_numbers<[1], [0], [0], [1], [0, 0, 1, 1], [], []>} : vector<8x128xf32>, vector<128x8xf32>, vector<8x8xf32> -> vector<8x8xf32>
    %202 = vector.shape_cast %201 : vector<8x8xf32> to vector<2x4x8xf32>
    %c0_18 = arith.constant 0 : index
    %c0_19 = arith.constant 0 : index
    %c0_20 = arith.constant 0 : index
    %c0_21 = arith.constant 0 : index
    %203 = vector.load %arg5[%c0_18, %c0_19, %c0_20, %c0_21] : memref<2x1x4x8xf32, #tpu.memory_space<vmem>>, vector<2x1x4x8xf32>
    %204 = vector.shape_cast %203 : vector<2x1x4x8xf32> to vector<2x4x8xf32>
    %205 = vector.shape_cast %202 : vector<2x4x8xf32> to vector<2x1x4x8xf32>
    tpu.vector_store %arg5[%c0_18, %c0_19, %c0_20, %c0_21], %205 {strides = array<i32>} : memref<2x1x4x8xf32, #tpu.memory_space<vmem>>, vector<2x1x4x8xf32>,
    return
  }
  func.func @transform_0(%arg0: i32, %arg1: memref<3xi32, #tpu.memory_space<smem>>) -> (i32, i32, i32) {
    %c0_i32 = arith.constant 0 : i32
    %c0_i32_0 = arith.constant 0 : i32
    %c0_i32_1 = arith.constant 0 : i32
    return %arg0, %c0_i32, %c0_i32_0 : i32, i32, i32
  }
  func.func @transform_1(%arg0: i32, %arg1: memref<3xi32, #tpu.memory_space<smem>>) -> (i32, i32) {
    %c0_i32 = arith.constant 0 : i32
    %c0_i32_0 = arith.constant 0 : i32
    %c0_i32_1 = arith.constant 0 : i32
    return %c0_i32, %c0_i32_0 : i32, i32
  }
  func.func @transform_2(%arg0: i32, %arg1: memref<3xi32, #tpu.memory_space<smem>>) -> (i32, i32, i32) {
    %c0_i32 = arith.constant 0 : i32
    %c0_i32_0 = arith.constant 0 : i32
    %c0_i32_1 = arith.constant 0 : i32
    return %arg0, %c0_i32, %c0_i32_0 : i32, i32, i32
  }
  func.func @transform_3(%arg0: i32, %arg1: memref<3xi32, #tpu.memory_space<smem>>) -> (i32, i32, i32, i32) {
    %c0_i32 = arith.constant 0 : i32
    %c0_i32_0 = arith.constant 0 : i32
    %c0_i32_1 = arith.constant 0 : i32
    %c0_i32_2 = arith.constant 0 : i32
    return %c0_i32, %arg0, %c0_i32_0, %c0_i32_1 : i32, i32, i32, i32
  }
}

</mosaic_0001>

<llo_original>
// kernel: tpu_custom_call.1
$region0: #{tpu_custom_call.1}
  #allocation0 [shape = 'u32[]', space=smem, size = 0x4, offset = 0x4, fixed_abs, tag = 'smem constant byte address 0x4 - core index']
  #allocation1 [shape = 'u32[144,128]{1,0:T(1,128)}', space=vmem, size = 0x12000, scoped, tag = 'internal scratch']
  #allocation2 [shape = 's32[1]{0}', space=sflag, size = 0x4, scoped, tag = 'scoped memory for tpu_custom_call.1']
  #allocation3 [shape = 'u8[512]{0}', space=smem, size = 0x200, scoped, tag = 'prefetched SMEM operand 0']
  %s0 = inlined_call_operand.vmem [shape: s32[3], index: 0, kind: input, shape index: {}]
  %s1 = inlined_call_operand.vmem [shape: f32[3,4,17], index: 1, kind: input, shape index: {}]
  %s2 = inlined_call_operand.vmem [shape: f32[2,256], index: 2, kind: input, shape index: {}]
  %s3 = inlined_call_operand.vmem [shape: f32[3,128,8], index: 3, kind: input, shape index: {}]
  %s4 = inlined_call_operand.hbm [shape: f32[2,3,4,8], index: 4, kind: output, shape index: {}]
  %s5 = sld [smem:[#allocation0]]
  $region45: #{tpu_custom_call.1} parent=0
    _
  %s7 = ssub.s32 1, %s5
  %s8 = scalar_select 0, %s7, %s5
  %s9 = sshll.u32 %s0, 4
  %s10 = int_to_ptr.vmem [resolvable:$true] %s9
  %12 = dma.vmem_to_smem %s10, 16, [#allocation3], [#allocation2]
  %13 = dma.done [#allocation2], 16
  %14 = sfence
  $region1: #{tpu_custom_call.1} parent=0
    #allocation4 [shape = 'u8[8192]{0}', space=vmem, size = 0x2000, scoped, tag = 'output window, operand 0']
    #allocation5 [shape = 's32[2]{0}', space=sflag, size = 0x8, scoped, tag = 'scoped memory for tpu_custom_call.1']
    %15 = vsyncpa [#allocation5], 0
    %s16 = scalar_lea.sflag [#allocation5], 1
    %17 = vsyncpa %s16, 0
    loop: start=0, step=1, limit=5
    $region2: #{tpu_custom_call.1} parent=1 // loop_pre_header
      _
    $region3: #{tpu_custom_call.1} parent=1 // loop_header
      %s19 = sphi 0, %s23
      %p20 = scmp.ge.s32.totalorder %s19, 5
      %s29 = sphi 0, %s31
      %s32 = sphi 0, %s29
      %s33 = sphi 0, %s32
      %s49 = sphi 0, %s33
      %s53 = sphi 0, %s53
      %s55 = sphi 0, %s53
      %s56 = sphi 0, %s55
      %s70 = sphi 0, %s56
      %s76 = sphi 0, %s78
      %s79 = sphi 0, %s76
      %s80 = sphi 0, %s79
      %s96 = sphi 0, %s80
      %s102 = sphi 0, %s104
      %s105 = sphi 0, %s102
      %s106 = sphi 0, %s105
      %s122 = sphi 0, %s106
    $region4: #{tpu_custom_call.1} parent=1 // loop_header_branch
      %22 = sbr.rel (%p20) target = $region8
    $region5: #{tpu_custom_call.1} parent=1 // loop_body
      %s24 = ssub.s32 %s19, 1
      %s25 = ssub.s32 %s19, 2
      %s26 = sadd.s32 %s19, 1
      %s27 = ssub.s32 %s19, %s26
      %p28 = scmp.eq.s32.totalorder %s27, 0
      %s30 = sadd.s32 %s29, 1
      %s31 = scalar_select %p28, %s29, %s30
      %p34 = pneg %p28
      %p35 = scmp.eq.s32.totalorder %s19, 2
      %p36 = por %p34, %p35
      %p37 = scmp.ne.s32.totalorder %s29, %s32
      %p38 = scmp.eq.s32.totalorder %s19, 0
      %p39 = por %p37, %p38
      %p40 = scmp.ne.s32.totalorder %s29, %s32
      %p41 = scmp.eq.s32.totalorder %s24, 2
      %p42 = por %p40, %p41
      %p43 = scmp.ne.s32.totalorder %s32, %s33
      %p44 = scmp.eq.s32.totalorder %s24, 0
      %p45 = por %p43, %p44
      %p46 = scmp.ne.s32.totalorder %s32, %s33
      %p47 = scmp.eq.s32.totalorder %s25, 2
      %p48 = por %p46, %p47
      %p50 = scmp.ne.s32.totalorder %s33, %s49
      %p51 = scmp.eq.s32.totalorder %s25, 0
      %p52 = por %p50, %p51
      %s54 = sadd.s32 %s53, 1
      %p57 = scmp.eq.s32.totalorder %s19, 2
      %p58 = scmp.ne.s32.totalorder %s53, %s55
      %p59 = scmp.eq.s32.totalorder %s19, 0
      %p60 = por %p58, %p59
      %p61 = scmp.ne.s32.totalorder %s53, %s55
      %p62 = scmp.eq.s32.totalorder %s24, 2
      %p63 = por %p61, %p62
      %p64 = scmp.ne.s32.totalorder %s55, %s56
      %p65 = scmp.eq.s32.totalorder %s24, 0
      %p66 = por %p64, %p65
      %p67 = scmp.ne.s32.totalorder %s55, %s56
      %p68 = scmp.eq.s32.totalorder %s25, 2
      %p69 = por %p67, %p68
      %p71 = scmp.ne.s32.totalorder %s56, %s70
      %p72 = scmp.eq.s32.totalorder %s25, 0
      %p73 = por %p71, %p72
      %s74 = ssub.s32 %s19, %s26
      %p75 = scmp.eq.s32.totalorder %s74, 0
      %s77 = sadd.s32 %s76, 1
      %s78 = scalar_select %p75, %s76, %s77
      %p81 = pneg %p75
      %p82 = scmp.eq.s32.totalorder %s19, 2
      %p83 = por %p81, %p82
      %p84 = scmp.ne.s32.totalorder %s76, %s79
      %p85 = scmp.eq.s32.totalorder %s19, 0
      %p86 = por %p84, %p85
      %p87 = scmp.ne.s32.totalorder %s76, %s79
      %p88 = scmp.eq.s32.totalorder %s24, 2
      %p89 = por %p87, %p88
      %p90 = scmp.ne.s32.totalorder %s79, %s80
      %p91 = scmp.eq.s32.totalorder %s24, 0
      %p92 = por %p90, %p91
      %p93 = scmp.ne.s32.totalorder %s79, %s80
      %p94 = scmp.eq.s32.totalorder %s25, 2
      %p95 = por %p93, %p94
      %p97 = scmp.ne.s32.totalorder %s80, %s96
      %p98 = scmp.eq.s32.totalorder %s25, 0
      %p99 = por %p97, %p98
      %s100 = ssub.s32 %s19, %s26
      %p101 = scmp.eq.s32.totalorder %s100, 0
      %s103 = sadd.s32 %s102, 1
      %s104 = scalar_select %p101, %s102, %s103
      %p107 = pneg %p101
      %p108 = scmp.eq.s32.totalorder %s19, 2
      %p109 = por %p107, %p108
      %p110 = scmp.ne.s32.totalorder %s102, %s105
      %p111 = scmp.eq.s32.totalorder %s19, 0
      %p112 = por %p110, %p111
      %p113 = scmp.ne.s32.totalorder %s102, %s105
      %p114 = scmp.eq.s32.totalorder %s24, 2
      %p115 = por %p113, %p114
      %p116 = scmp.ne.s32.totalorder %s105, %s106
      %p117 = scmp.eq.s32.totalorder %s24, 0
      %p118 = por %p116, %p117
      %p119 = scmp.ne.s32.totalorder %s105, %s106
      %p120 = scmp.eq.s32.totalorder %s25, 2
      %p121 = por %p119, %p120
      %p123 = scmp.ne.s32.totalorder %s106, %s122
      %p124 = scmp.eq.s32.totalorder %s25, 0
      %p125 = por %p123, %p124
      %p126 = scmp.le.s32.totalorder 1, %s19
      %p127 = scmp.lt.s32.totalorder %s19, 4
      %p128 = pnand %p126, %p127
      %p129 = pneg %p128
      // Predicated region
      $region9: #{tpu_custom_call.1} parent=5 // pred_check
        _
      $region10: #{tpu_custom_call.1} parent=5 // pred_check_branch
        %131 = sbr.rel (%p128) target = $region12
      $region11: #{tpu_custom_call.1} parent=5 // pred_region
        %s132 = ssub.s32 %s19, 1
        // Predicated region
        $region13: #{tpu_custom_call.1} parent=11 // pred_check
          %p133 = pneg %p66
        $region14: #{tpu_custom_call.1} parent=11 // pred_check_branch
          %135 = sbr.rel (%p133) target = $region16
        $region15: #{tpu_custom_call.1} parent=11 // pred_region
          _
        $region16: #{tpu_custom_call.1} parent=11 // pred_fallthru
          _
      $region12: #{tpu_custom_call.1} parent=5 // pred_fallthru
        _
      %p136 = scmp.lt.s32.totalorder %s19, 3
      // Predicated region
      $region17: #{tpu_custom_call.1} parent=5 // pred_check
        %p137 = pneg %p136
      $region18: #{tpu_custom_call.1} parent=5 // pred_check_branch
        %139 = sbr.rel (%p137) target = $region20
      $region19: #{tpu_custom_call.1} parent=5 // pred_region
        // Predicated region
        $region21: #{tpu_custom_call.1} parent=19 // pred_check
          %p140 = pneg %p39
        $region22: #{tpu_custom_call.1} parent=19 // pred_check_branch
          %142 = sbr.rel (%p140) target = $region24
        $region23: #{tpu_custom_call.1} parent=19 // pred_region
          %p143 = scmp.lt.s32.totalorder %s19, 2
          %s144 = scalar_select %p143, %s19, 2
          %s145 = smul.addr %s144, 4
          %s146 = scalar_lea.vmem %s1, %s145
        $region24: #{tpu_custom_call.1} parent=19 // pred_fallthru
          _
        // Predicated region
        $region25: #{tpu_custom_call.1} parent=19 // pred_check
          %p147 = pneg %p86
        $region26: #{tpu_custom_call.1} parent=19 // pred_check_branch
          %149 = sbr.rel (%p147) target = $region28
        $region27: #{tpu_custom_call.1} parent=19 // pred_region
          %p150 = scmp.lt.s32.totalorder %s19, 2
          %s151 = scalar_select %p150, %s19, 2
          %s152 = smul.addr %s151, 16
          %s153 = smul.addr %s152, 8
          %s154 = scalar_lea.vmem %s3, %s153
        $region28: #{tpu_custom_call.1} parent=19 // pred_fallthru
          _
      $region20: #{tpu_custom_call.1} parent=5 // pred_fallthru
        _
      %p155 = scmp.le.s32.totalorder 1, %s19
      %p156 = scmp.lt.s32.totalorder %s19, 4
      %p157 = pnand %p155, %p156
      %p158 = pneg %p157
      // Predicated region
      $region29: #{tpu_custom_call.1} parent=5 // pred_check
        _
      $region30: #{tpu_custom_call.1} parent=5 // pred_check_branch
        %160 = sbr.rel (%p157) target = $region32
      $region31: #{tpu_custom_call.1} parent=5 // pred_region
        %s161 = ssub.s32 %s19, 1
        %p162 = scmp.lt.s32.totalorder %s24, 2
        %s163 = scalar_select %p162, %s24, 2
        %s164 = smul.addr %s163, 4
        %s165 = scalar_lea.vmem %s1, %s164
        %p166 = pneg %p45
        %p167 = pneg %p42
        %p168 = pneg %p66
        %p169 = pneg %p63
        %p170 = scmp.lt.s32.totalorder %s24, 2
        %s171 = scalar_select %p170, %s24, 2
        %s172 = smul.addr %s171, 16
        %s173 = smul.addr %s172, 8
        %s174 = scalar_lea.vmem %s3, %s173
        %p175 = pneg %p92
        %p176 = pneg %p89
        %p177 = pneg %p118
        %p178 = pneg %p115
        %s179 = sand.u32 %s105, 1
        %s180 = scalar_lea.sflag [#allocation5], %s179
        %s181 = sand.u32 %s105, 1
        %s182 = smul.addr %s181, 8
        %s183 = scalar_lea.vmem [#allocation4], %s182
        %p184 = scmp.lt.s32.totalorder %s24, 2
        %s185 = scalar_select %p184, %s24, 2
        %s186 = smul.addr %s185, 4
        %s187 = scalar_lea.vmem %s1, %s186
        %p188 = scmp.lt.s32.totalorder %s24, 2
        %s189 = scalar_select %p188, %s24, 2
        %s190 = smul.addr %s189, 16
        %s191 = smul.addr %s190, 8
        %s192 = scalar_lea.vmem %s3, %s191
        %v193 = vld [vmem:[%s187] sm:$0xf]
        %v194 = vld [vmem:[%s2] sm:$0xf]
        %v195 = vld [vmem:[%s192] sm:$0xff]
        %v196 = vld [vmem:[%s192 + $0x8] sm:$0xff]
        %v197 = vld [vmem:[%s192 + $0x10] sm:$0xff]
        %v198 = vld [vmem:[%s192 + $0x18] sm:$0xff]
        %v199 = vld [vmem:[%s192 + $0x20] sm:$0xff]
        %v200 = vld [vmem:[%s192 + $0x28] sm:$0xff]
        %v201 = vld [vmem:[%s192 + $0x30] sm:$0xff]
        %v202 = vld [vmem:[%s192 + $0x38] sm:$0xff]
        %v203 = vld [vmem:[%s192 + $0x40] sm:$0xff]
        %v204 = vld [vmem:[%s192 + $0x48] sm:$0xff]
        %v205 = vld [vmem:[%s192 + $0x50] sm:$0xff]
        %v206 = vld [vmem:[%s192 + $0x58] sm:$0xff]
        %v207 = vld [vmem:[%s192 + $0x60] sm:$0xff]
        %v208 = vld [vmem:[%s192 + $0x68] sm:$0xff]
        %v209 = vld [vmem:[%s192 + $0x70] sm:$0xff]
        %v210 = vld [vmem:[%s192 + $0x78] sm:$0xff]
        %v213 = vunpack.c.l.s4 1966171168
        %v214 = vunpack.c.0.s8 %v213
        %v215 = vlaneseq
        %v216 = vshrl.u32 %v215, 7
        %v217 = vsub.s32 %v214, %v216
        %v218 = vrot.slane %v194, %v217
        %v219 = vcombine.high %v218, %v218
        %221 = vset.pattern.permute.xlu0 0
        %222 = vperm.xlu0 %221, %v193
        %v223 = vpop.permute.xlu0 %222
        %v225 = vlaneseq
        %v226 = vshrl.u32 %v225, 7
        %v227 = vsub.s32 0, %v226
        %v228 = vrot.slane %v218, %v227
        %v229 = vlaneseq
        %v230 = vshrl.u32 %v229, 7
        %v231 = vsub.s32 0, %v230
        %v232 = vrot.slane %v219, %v231
        %v235 = vmul.f32 %v223, %v228
        %v236 = vmul.f32 %v223, %v232
        %v237 = vadd.f32 %v235, 0.0
        %v238 = vadd.f32 %v236, 0.0
        %239 = vset.pattern.permute.xlu0 1
        %240 = vperm.xlu0 %239, %v193
        %v241 = vpop.permute.xlu0 %240
        %v243 = vlaneseq
        %v244 = vshrl.u32 %v243, 7
        %v245 = vsub.s32 1, %v244
        %v246 = vrot.slane %v218, %v245
        %v247 = vlaneseq
        %v248 = vshrl.u32 %v247, 7
        %v249 = vsub.s32 1, %v248
        %v250 = vrot.slane %v219, %v249
        %v253 = vmul.f32 %v241, %v228
        %v254 = vmul.f32 %v241, %v246
        %v255 = vmul.f32 %v241, %v232
        %v256 = vmul.f32 %v241, %v250
        %261 = vrot.lane.b32.xlu0 %v253, 127
        %v262 = vpop.permute.xlu0 %261
        %263 = vrot.lane.b32.xlu0 %v254, 127
        %v264 = vpop.permute.xlu0 %263
        %265 = vrot.lane.b32.xlu0 %v255, 127
        %v266 = vpop.permute.xlu0 %265
        %267 = vrot.lane.b32.xlu0 %v256, 127
        %v268 = vpop.permute.xlu0 %267
        %vm269 = vcmask 1039360
        %v270 = vsel %vm269, %v262, %v264
        %v271 = vsel %vm269, %v266, %v268
        %v274 = vadd.f32 %v237, %v270
        %v275 = vadd.f32 %v238, %v271
        %276 = vset.pattern.permute.xlu0 2
        %277 = vperm.xlu0 %276, %v193
        %v278 = vpop.permute.xlu0 %277
        %v280 = vmul.f32 %v278, %v228
        %v281 = vmul.f32 %v278, %v246
        %v282 = vmul.f32 %v278, %v232
        %v283 = vmul.f32 %v278, %v250
        %288 = vrot.lane.b32.xlu0 %v280, 126
        %v289 = vpop.permute.xlu0 %288
        %290 = vrot.lane.b32.xlu0 %v281, 126
        %v291 = vpop.permute.xlu0 %290
        %292 = vrot.lane.b32.xlu0 %v282, 126
        %v293 = vpop.permute.xlu0 %292
        %294 = vrot.lane.b32.xlu0 %v283, 126
        %v295 = vpop.permute.xlu0 %294
        %vm296 = vcmask 1031168
        %v297 = vsel %vm296, %v289, %v291
        %v298 = vsel %vm296, %v293, %v295
        %v301 = vadd.f32 %v274, %v297
        %v302 = vadd.f32 %v275, %v298
        %303 = vset.pattern.permute.xlu0 3
        %304 = vperm.xlu0 %303, %v193
        %v305 = vpop.permute.xlu0 %304
        %v307 = vmul.f32 %v305, %v228
        %v308 = vmul.f32 %v305, %v246
        %v309 = vmul.f32 %v305, %v232
        %v310 = vmul.f32 %v305, %v250
        %315 = vrot.lane.b32.xlu0 %v307, 125
        %v316 = vpop.permute.xlu0 %315
        %317 = vrot.lane.b32.xlu0 %v308, 125
        %v318 = vpop.permute.xlu0 %317
        %319 = vrot.lane.b32.xlu0 %v309, 125
        %v320 = vpop.permute.xlu0 %319
        %321 = vrot.lane.b32.xlu0 %v310, 125
        %v322 = vpop.permute.xlu0 %321
        %vm323 = vcmask 1022976
        %v324 = vsel %vm323, %v316, %v318
        %v325 = vsel %vm323, %v320, %v322
        %v328 = vadd.f32 %v301, %v324
        %v329 = vadd.f32 %v302, %v325
        %330 = vset.pattern.permute.xlu0 4
        %331 = vperm.xlu0 %330, %v193
        %v332 = vpop.permute.xlu0 %331
        %v334 = vmul.f32 %v332, %v228
        %v335 = vmul.f32 %v332, %v246
        %v336 = vmul.f32 %v332, %v232
        %v337 = vmul.f32 %v332, %v250
        %342 = vrot.lane.b32.xlu0 %v334, 124
        %v343 = vpop.permute.xlu0 %342
        %344 = vrot.lane.b32.xlu0 %v335, 124
        %v345 = vpop.permute.xlu0 %344
        %346 = vrot.lane.b32.xlu0 %v336, 124
        %v347 = vpop.permute.xlu0 %346
        %348 = vrot.lane.b32.xlu0 %v337, 124
        %v349 = vpop.permute.xlu0 %348
        %vm350 = vcmask 1014784
        %v351 = vsel %vm350, %v343, %v345
        %v352 = vsel %vm350, %v347, %v349
        %v355 = vadd.f32 %v328, %v351
        %v356 = vadd.f32 %v329, %v352
        %357 = vset.pattern.permute.xlu0 5
        %358 = vperm.xlu0 %357, %v193
        %v359 = vpop.permute.xlu0 %358
        %v361 = vmul.f32 %v359, %v228
        %v362 = vmul.f32 %v359, %v246
        %v363 = vmul.f32 %v359, %v232
        %v364 = vmul.f32 %v359, %v250
        %369 = vrot.lane.b32.xlu0 %v361, 123
        %v370 = vpop.permute.xlu0 %369
        %371 = vrot.lane.b32.xlu0 %v362, 123
        %v372 = vpop.permute.xlu0 %371
        %373 = vrot.lane.b32.xlu0 %v363, 123
        %v374 = vpop.permute.xlu0 %373
        %375 = vrot.lane.b32.xlu0 %v364, 123
        %v376 = vpop.permute.xlu0 %375
        %vm377 = vcmask 1006592
        %v378 = vsel %vm377, %v370, %v372
        %v379 = vsel %vm377, %v374, %v376
        %v382 = vadd.f32 %v355, %v378
        %v383 = vadd.f32 %v356, %v379
        %384 = vset.pattern.permute.xlu0 6
        %385 = vperm.xlu0 %384, %v193
        %v386 = vpop.permute.xlu0 %385
        %v388 = vmul.f32 %v386, %v228
        %v389 = vmul.f32 %v386, %v246
        %v390 = vmul.f32 %v386, %v232
        %v391 = vmul.f32 %v386, %v250
        %396 = vrot.lane.b32.xlu0 %v388, 122
        %v397 = vpop.permute.xlu0 %396
        %398 = vrot.lane.b32.xlu0 %v389, 122
        %v399 = vpop.permute.xlu0 %398
        %400 = vrot.lane.b32.xlu0 %v390, 122
        %v401 = vpop.permute.xlu0 %400
        %402 = vrot.lane.b32.xlu0 %v391, 122
        %v403 = vpop.permute.xlu0 %402
        %vm404 = vcmask 998400
        %v405 = vsel %vm404, %v397, %v399
        %v406 = vsel %vm404, %v401, %v403
        %v409 = vadd.f32 %v382, %v405
        %v410 = vadd.f32 %v383, %v406
        %411 = vset.pattern.permute.xlu0 7
        %412 = vperm.xlu0 %411, %v193
        %v413 = vpop.permute.xlu0 %412
        %v415 = vmul.f32 %v413, %v228
        %v416 = vmul.f32 %v413, %v246
        %v417 = vmul.f32 %v413, %v232
        %v418 = vmul.f32 %v413, %v250
        %423 = vrot.lane.b32.xlu0 %v415, 121
        %v424 = vpop.permute.xlu0 %423
        %425 = vrot.lane.b32.xlu0 %v416, 121
        %v426 = vpop.permute.xlu0 %425
        %427 = vrot.lane.b32.xlu0 %v417, 121
        %v428 = vpop.permute.xlu0 %427
        %429 = vrot.lane.b32.xlu0 %v418, 121
        %v430 = vpop.permute.xlu0 %429
        %vm431 = vcmask 990208
        %v432 = vsel %vm431, %v424, %v426
        %v433 = vsel %vm431, %v428, %v430
        %v436 = vadd.f32 %v409, %v432
        %v437 = vadd.f32 %v410, %v433
        %438 = vset.pattern.permute.xlu0 8
        %439 = vperm.xlu0 %438, %v193
        %v440 = vpop.permute.xlu0 %439
        %v442 = vmul.f32 %v440, %v228
        %v443 = vmul.f32 %v440, %v246
        %v444 = vmul.f32 %v440, %v232
        %v445 = vmul.f32 %v440, %v250
        %450 = vrot.lane.b32.xlu0 %v442, 120
        %v451 = vpop.permute.xlu0 %450
        %452 = vrot.lane.b32.xlu0 %v443, 120
        %v453 = vpop.permute.xlu0 %452
        %454 = vrot.lane.b32.xlu0 %v444, 120
        %v455 = vpop.permute.xlu0 %454
        %456 = vrot.lane.b32.xlu0 %v445, 120
        %v457 = vpop.permute.xlu0 %456
        %vm458 = vcmask 982016
        %v459 = vsel %vm458, %v451, %v453
        %v460 = vsel %vm458, %v455, %v457
        %v463 = vadd.f32 %v436, %v459
        %v464 = vadd.f32 %v437, %v460
        %465 = vset.pattern.permute.xlu0 9
        %466 = vperm.xlu0 %465, %v193
        %v467 = vpop.permute.xlu0 %466
        %v469 = vmul.f32 %v467, %v228
        %v470 = vmul.f32 %v467, %v246
        %v471 = vmul.f32 %v467, %v232
        %v472 = vmul.f32 %v467, %v250
        %477 = vrot.lane.b32.xlu0 %v469, 119
        %v478 = vpop.permute.xlu0 %477
        %479 = vrot.lane.b32.xlu0 %v470, 119
        %v480 = vpop.permute.xlu0 %479
        %481 = vrot.lane.b32.xlu0 %v471, 119
        %v482 = vpop.permute.xlu0 %481
        %483 = vrot.lane.b32.xlu0 %v472, 119
        %v484 = vpop.permute.xlu0 %483
        %vm485 = vcmask 973824
        %v486 = vsel %vm485, %v478, %v480
        %v487 = vsel %vm485, %v482, %v484
        %v490 = vadd.f32 %v463, %v486
        %v491 = vadd.f32 %v464, %v487
        %492 = vset.pattern.permute.xlu0 10
        %493 = vperm.xlu0 %492, %v193
        %v494 = vpop.permute.xlu0 %493
        %v496 = vmul.f32 %v494, %v228
        %v497 = vmul.f32 %v494, %v246
        %v498 = vmul.f32 %v494, %v232
        %v499 = vmul.f32 %v494, %v250
        %504 = vrot.lane.b32.xlu0 %v496, 118
        %v505 = vpop.permute.xlu0 %504
        %506 = vrot.lane.b32.xlu0 %v497, 118
        %v507 = vpop.permute.xlu0 %506
        %508 = vrot.lane.b32.xlu0 %v498, 118
        %v509 = vpop.permute.xlu0 %508
        %510 = vrot.lane.b32.xlu0 %v499, 118
        %v511 = vpop.permute.xlu0 %510
        %vm512 = vcmask 965632
        %v513 = vsel %vm512, %v505, %v507
        %v514 = vsel %vm512, %v509, %v511
        %v517 = vadd.f32 %v490, %v513
        %v518 = vadd.f32 %v491, %v514
        %519 = vset.pattern.permute.xlu0 11
        %520 = vperm.xlu0 %519, %v193
        %v521 = vpop.permute.xlu0 %520
        %v523 = vmul.f32 %v521, %v228
        %v524 = vmul.f32 %v521, %v246
        %v525 = vmul.f32 %v521, %v232
        %v526 = vmul.f32 %v521, %v250
        %531 = vrot.lane.b32.xlu0 %v523, 117
        %v532 = vpop.permute.xlu0 %531
        %533 = vrot.lane.b32.xlu0 %v524, 117
        %v534 = vpop.permute.xlu0 %533
        %535 = vrot.lane.b32.xlu0 %v525, 117
        %v536 = vpop.permute.xlu0 %535
        %537 = vrot.lane.b32.xlu0 %v526, 117
        %v538 = vpop.permute.xlu0 %537
        %vm539 = vcmask 957440
        %v540 = vsel %vm539, %v532, %v534
        %v541 = vsel %vm539, %v536, %v538
        %v544 = vadd.f32 %v517, %v540
        %v545 = vadd.f32 %v518, %v541
        %546 = vset.pattern.permute.xlu0 12
        %547 = vperm.xlu0 %546, %v193
        %v548 = vpop.permute.xlu0 %547
        %v550 = vmul.f32 %v548, %v228
        %v551 = vmul.f32 %v548, %v246
        %v552 = vmul.f32 %v548, %v232
        %v553 = vmul.f32 %v548, %v250
        %558 = vrot.lane.b32.xlu0 %v550, 116
        %v559 = vpop.permute.xlu0 %558
        %560 = vrot.lane.b32.xlu0 %v551, 116
        %v561 = vpop.permute.xlu0 %560
        %562 = vrot.lane.b32.xlu0 %v552, 116
        %v563 = vpop.permute.xlu0 %562
        %564 = vrot.lane.b32.xlu0 %v553, 116
        %v565 = vpop.permute.xlu0 %564
        %vm566 = vcmask 949248
        %v567 = vsel %vm566, %v559, %v561
        %v568 = vsel %vm566, %v563, %v565
        %v571 = vadd.f32 %v544, %v567
        %v572 = vadd.f32 %v545, %v568
        %573 = vset.pattern.permute.xlu0 13
        %574 = vperm.xlu0 %573, %v193
        %v575 = vpop.permute.xlu0 %574
        %v577 = vmul.f32 %v575, %v228
        %v578 = vmul.f32 %v575, %v246
        %v579 = vmul.f32 %v575, %v232
        %v580 = vmul.f32 %v575, %v250
        %585 = vrot.lane.b32.xlu0 %v577, 115
        %v586 = vpop.permute.xlu0 %585
        %587 = vrot.lane.b32.xlu0 %v578, 115
        %v588 = vpop.permute.xlu0 %587
        %589 = vrot.lane.b32.xlu0 %v579, 115
        %v590 = vpop.permute.xlu0 %589
        %591 = vrot.lane.b32.xlu0 %v580, 115
        %v592 = vpop.permute.xlu0 %591
        %vm593 = vcmask 941056
        %v594 = vsel %vm593, %v586, %v588
        %v595 = vsel %vm593, %v590, %v592
        %v598 = vadd.f32 %v571, %v594
        %v599 = vadd.f32 %v572, %v595
        %600 = vset.pattern.permute.xlu0 14
        %601 = vperm.xlu0 %600, %v193
        %v602 = vpop.permute.xlu0 %601
        %v604 = vmul.f32 %v602, %v228
        %v605 = vmul.f32 %v602, %v246
        %v606 = vmul.f32 %v602, %v232
        %v607 = vmul.f32 %v602, %v250
        %612 = vrot.lane.b32.xlu0 %v604, 114
        %v613 = vpop.permute.xlu0 %612
        %614 = vrot.lane.b32.xlu0 %v605, 114
        %v615 = vpop.permute.xlu0 %614
        %616 = vrot.lane.b32.xlu0 %v606, 114
        %v617 = vpop.permute.xlu0 %616
        %618 = vrot.lane.b32.xlu0 %v607, 114
        %v619 = vpop.permute.xlu0 %618
        %vm620 = vcmask 932864
        %v621 = vsel %vm620, %v613, %v615
        %v622 = vsel %vm620, %v617, %v619
        %v625 = vadd.f32 %v598, %v621
        %v626 = vadd.f32 %v599, %v622
        %627 = vset.pattern.permute.xlu0 15
        %628 = vperm.xlu0 %627, %v193
        %v629 = vpop.permute.xlu0 %628
        %v631 = vmul.f32 %v629, %v228
        %v632 = vmul.f32 %v629, %v246
        %v633 = vmul.f32 %v629, %v232
        %v634 = vmul.f32 %v629, %v250
        %639 = vrot.lane.b32.xlu0 %v631, 113
        %v640 = vpop.permute.xlu0 %639
        %641 = vrot.lane.b32.xlu0 %v632, 113
        %v642 = vpop.permute.xlu0 %641
        %643 = vrot.lane.b32.xlu0 %v633, 113
        %v644 = vpop.permute.xlu0 %643
        %645 = vrot.lane.b32.xlu0 %v634, 113
        %v646 = vpop.permute.xlu0 %645
        %vm647 = vcmask 924672
        %v648 = vsel %vm647, %v640, %v642
        %v649 = vsel %vm647, %v644, %v646
        %v652 = vadd.f32 %v625, %v648
        %v653 = vadd.f32 %v626, %v649
        %654 = vset.pattern.permute.xlu0 16
        %655 = vperm.xlu0 %654, %v193
        %v656 = vpop.permute.xlu0 %655
        %v658 = vmul.f32 %v656, %v228
        %v659 = vmul.f32 %v656, %v246
        %v660 = vmul.f32 %v656, %v232
        %v661 = vmul.f32 %v656, %v250
        %666 = vrot.lane.b32.xlu0 %v658, 112
        %v667 = vpop.permute.xlu0 %666
        %668 = vrot.lane.b32.xlu0 %v659, 112
        %v669 = vpop.permute.xlu0 %668
        %670 = vrot.lane.b32.xlu0 %v660, 112
        %v671 = vpop.permute.xlu0 %670
        %672 = vrot.lane.b32.xlu0 %v661, 112
        %v673 = vpop.permute.xlu0 %672
        %vm674 = vcmask 916480
        %v675 = vsel %vm674, %v667, %v669
        %v676 = vsel %vm674, %v671, %v673
        %v679 = vadd.f32 %v652, %v675
        %v680 = vadd.f32 %v653, %v676
        %s681 = sld [smem:[#allocation3 + %s24]]
        %v682 = vlaneseq
        %v683 = vand.u32 %v682, 127
        %v684 = vstv %s681
        %vm685 = vcmp.lt.s32.totalorder %v683, %v684
        %v686 = vsel %vm685, 1, 0
        %vm687 = vcmp.eq.s32.totalorder %v686, 1
        %v688 = vsel %vm687, %v679, 0.0
        %v689 = vsel %vm687, %v680, 0.0
        %s690 = smul.u32 %s681, 2
        %s691 = scvt.s32.f32 %s690
        %v692 = vstv %s691
        %v693 = vrcp.pop %v692
        %s694 = vtos %v693
        %vm695 = vcmask 1043456
        %v696 = vsel %vm695, %v688, 0.0
        %697 = vadd.xlane.f32.xlu0 %v696
        %v698 = vpop.xlane.xlu0 %697
        %v699 = vsel %vm695, %v689, 0.0
        %700 = vadd.xlane.f32.xlu0 %v699
        %v701 = vpop.xlane.xlu0 %700
        %v702 = vmul.f32 %v688, %v688
        %v703 = vmul.f32 %v689, %v689
        %v704 = vsel %vm695, %v702, 0.0
        %705 = vadd.xlane.f32.xlu0 %v704
        %v706 = vpop.xlane.xlu0 %705
        %v707 = vsel %vm695, %v703, 0.0
        %708 = vadd.xlane.f32.xlu0 %v707
        %v709 = vpop.xlane.xlu0 %708
        %v710 = vsel %vm695, %v698, 0.0
        %v711 = vsel %vm695, %v701, 0.0
        %v712 = vadd.f32 %v710, %v711
        %v713 = vstv %s694
        %v714 = vmul.f32 %v712, %v713
        %v715 = vsel %vm695, %v706, 0.0
        %v716 = vsel %vm695, %v709, 0.0
        %v717 = vadd.f32 %v715, %v716
        %v718 = vmul.f32 %v717, %v713
        %v719 = vmul.f32 %v714, %v714
        %v720 = vsub.f32 %v718, %v719
        %v721 = vmax.f32 %v720, 0.0
        %v722 = vadd.f32 %v721, 1e-05
        %v723 = vrsqrt.pop %v722
        %v724 = vsub.f32 0.0, %v714
        %v725 = vmul.f32 %v724, %v723
        %v726 = vmul.f32 %v679, %v723
        %v727 = vmul.f32 %v680, %v723
        %v728 = vadd.f32 %v726, %v725
        %v729 = vadd.f32 %v727, %v725
        %v730 = vmax.f32 %v728, 0.0
        %v731 = vmax.f32 %v729, 0.0
        %v734 = vcombine.low %v730, %v731
        %736 = vmatprep.subr.mxu0 0.0
        %737 = vmatpush1.msra.mxu0 %v210
        %738 = vmatprep.subr.mxu0 0.0
        %739 = vmatpush1.msra.mxu0 %v209
        %740 = vmatprep.subr.mxu0 0.0
        %741 = vmatpush1.msra.mxu0 %v208
        %742 = vmatprep.subr.mxu0 0.0
        %743 = vmatpush1.msra.mxu0 %v207
        %744 = vmatprep.subr.mxu0 0.0
        %745 = vmatpush1.msra.mxu0 %v206
        %746 = vmatprep.subr.mxu0 0.0
        %747 = vmatpush1.msra.mxu0 %v205
        %748 = vmatprep.subr.mxu0 0.0
        %749 = vmatpush1.msra.mxu0 %v204
        %750 = vmatprep.subr.mxu0 0.0
        %751 = vmatpush1.msra.mxu0 %v203
        %752 = vmatprep.subr.mxu0 0.0
        %753 = vmatpush1.msra.mxu0 %v202
        %754 = vmatprep.subr.mxu0 0.0
        %755 = vmatpush1.msra.mxu0 %v201
        %756 = vmatprep.subr.mxu0 0.0
        %757 = vmatpush1.msra.mxu0 %v200
        %758 = vmatprep.subr.mxu0 0.0
        %759 = vmatpush1.msra.mxu0 %v199
        %760 = vmatprep.subr.mxu0 0.0
        %761 = vmatpush1.msra.mxu0 %v198
        %762 = vmatprep.subr.mxu0 0.0
        %763 = vmatpush1.msra.mxu0 %v197
        %764 = vmatprep.subr.mxu0 0.0
        %765 = vmatpush1.msra.mxu0 %v196
        %766 = vmatprep.subr.mxu0 0.0
        %767 = vmatpush1.msra.mxu0 %v195
        %768 = vmatprep.subr.mxu0 0.0
        %769 = vmatpush2.msra.mxu0 0.0
        %770 = vmatprep.subr.mxu0 0.0
        %771 = vmatpush2.msra.mxu0 0.0
        %772 = vmatprep.subr.mxu0 0.0
        %773 = vmatpush2.msra.mxu0 0.0
        %774 = vmatprep.subr.mxu0 0.0
        %775 = vmatpush2.msra.mxu0 0.0
        %776 = vmatprep.subr.mxu0 0.0
        %777 = vmatpush2.msra.mxu0 0.0
        %778 = vmatprep.subr.mxu0 0.0
        %779 = vmatpush2.msra.mxu0 0.0
        %780 = vmatprep.subr.mxu0 0.0
        %781 = vmatpush2.msra.mxu0 0.0
        %782 = vmatprep.subr.mxu0 0.0
        %783 = vmatpush2.msra.mxu0 0.0
        %784 = vmatprep.subr.mxu0 0.0
        %785 = vmatpush2.msra.mxu0 0.0
        %786 = vmatprep.subr.mxu0 0.0
        %787 = vmatpush2.msra.mxu0 0.0
        %788 = vmatprep.subr.mxu0 0.0
        %789 = vmatpush2.msra.mxu0 0.0
        %790 = vmatprep.subr.mxu0 0.0
        %791 = vmatpush2.msra.mxu0 0.0
        %792 = vmatprep.subr.mxu0 0.0
        %793 = vmatpush2.msra.mxu0 0.0
        %794 = vmatprep.subr.mxu0 0.0
        %795 = vmatpush2.msra.mxu0 0.0
        %796 = vmatprep.subr.mxu0 0.0
        %797 = vmatpush2.msra.mxu0 0.0
        %798 = vmatprep.subr.mxu0 0.0
        %799 = vmatpush2.msra.mxu0 0.0
        %800 = vmatprep.mubr.f32.mxu0 0.0
        %801 = vmatmul.mubr.f32.gmra.mxu0 %v734
        %v802 = vpop.f32.mrf.mxu0
        %v803 = vadd.f32 0.0, %v802
        %v804 = vpop.f32.mrf.mxu0
        %805 = vdwg.mxu0
        %v807 = vcombine.high %v803, %v803
        %vm809 = vcmask 60416
        %810 = vst.msk [vmem:[%s183] sm:$0xf] %vm809, %v803
        %811 = vst.msk [vmem:[%s183 + $0x4] sm:$0xf] %vm809, %v807
        %s812 = sand.u32 %s105, 1
        %s813 = scalar_lea.sflag [#allocation5], %s812
        %s814 = sand.u32 %s105, 1
        %s815 = smul.addr %s814, 8
        %s816 = scalar_lea.vmem [#allocation4], %s815
        // Predicated region
        $region33: #{tpu_custom_call.1} parent=31 // pred_check
          %p817 = pneg %p115
        $region34: #{tpu_custom_call.1} parent=31 // pred_check_branch
          %819 = sbr.rel (%p817) target = $region36
        $region35: #{tpu_custom_call.1} parent=31 // pred_region
          %s821 = ssub.s32 128, 128
          %822 = vsyncadd %s813, %s821
          %s823 = smul.addr %s24, 64
          %s824 = scalar_lea.hbm %s4, %s823
          %s825 = sshll.u32 %s816, 4
          %s826 = int_to_ptr.vmem [resolvable:$true] %s825
          %831 = dma.vmem_to_hbm [thread:$0]  %s826, 128, %s824, %s813, 64, 192, 4
        $region36: #{tpu_custom_call.1} parent=31 // pred_fallthru
          _
      $region32: #{tpu_custom_call.1} parent=5 // pred_fallthru
        _
      %p832 = scmp.le.s32.totalorder 2, %s19
      // Predicated region
      $region37: #{tpu_custom_call.1} parent=5 // pred_check
        %p833 = pneg %p832
      $region38: #{tpu_custom_call.1} parent=5 // pred_check_branch
        %835 = sbr.rel (%p833) target = $region40
      $region39: #{tpu_custom_call.1} parent=5 // pred_region
        %s836 = ssub.s32 %s19, 2
        // Predicated region
        $region41: #{tpu_custom_call.1} parent=39 // pred_check
          %p837 = pneg %p121
        $region42: #{tpu_custom_call.1} parent=39 // pred_check_branch
          %839 = sbr.rel (%p837) target = $region44
        $region43: #{tpu_custom_call.1} parent=39 // pred_region
          %s840 = sand.u32 %s106, 1
          %s841 = scalar_lea.sflag [#allocation5], %s840
          %s842 = sand.u32 %s106, 1
          %s843 = smul.addr %s842, 8
          %s844 = scalar_lea.vmem [#allocation4], %s843
          %845 = dma.done %s841, 128
        $region44: #{tpu_custom_call.1} parent=39 // pred_fallthru
          _
      $region40: #{tpu_custom_call.1} parent=5 // pred_fallthru
        _
    $region6: #{tpu_custom_call.1} parent=1 // loop_footer
      %s23 = sadd.s32 1, %s19
    $region7: #{tpu_custom_call.1} parent=1 // loop_footer_branch
      %18 = sbr.rel target = $region3
    $region8: #{tpu_custom_call.1} parent=1 // loop_exit
      _
    %846 = vsyncpa [#allocation5], 1
    %s847 = scalar_lea.sflag [#allocation5], 1
    %848 = vsyncpa %s847, 1

</llo_original>
